<compile_context>
chip_gen: v7x
topology: tpu7x:2x2x1
jax: 0.10.0
libtpu: 0.0.40
codegen_flags: <defaults>
</compile_context>

<pallas_src>
import jax
import jax.numpy as jnp
from jax.experimental import pallas as pl
from jax.experimental.pallas import tpu as pltpu


def _conv_tanh_kernel(x_ref, w_ref, b_ref, o_ref):
    # x_ref: (K, TILE_M) patches^T   w_ref: (Cout, K)   b_ref: (Cout, 1)
    # o_ref: (Cout, TILE_M)
    acc = jnp.dot(w_ref[...], x_ref[...], preferred_element_type=jnp.float32)
    # jnp.tanh lowers to the EUP unit (separate VLIW slot) -> free under DMA.
    o_ref[...] = jnp.tanh(acc + b_ref[...]).astype(o_ref.dtype)


def conv2d_tanh(x_nchw, weight, bias, *, tile_m=16384, out_dtype=jnp.float32):
    """tanh(Conv2d(3, 64, kernel_size=2, stride=2, padding=0)(x)).

    x_nchw: (N, 3, H, W) float32.
    weight: (64, 3, 2, 2) float32 (PyTorch OIHW layout).
    bias:   (64,) float32.
    Returns (N, 64, H//2, W//2) in out_dtype (float32 by default).
    """
    N, C, H, W = x_nchw.shape
    Cout = weight.shape[0]
    Ho, Wo = H // 2, W // 2
    K = C * 4
    M = Ho * Wo

    # Drop trailing odd row/col (no-op for even H, W), then patchify:
    #   (N,C,Ho,2,Wo,2) -> (N, C,kh,kw, Ho,Wo) -> (N, K, M)
    x_even = x_nchw[:, :, : 2 * Ho, : 2 * Wo]
    x6 = x_even.reshape(N, C, Ho, 2, Wo, 2)
    patches_t = x6.transpose(0, 1, 3, 5, 2, 4).reshape(N, K, M)

    # Weight flattened to (Cout, K) with the same (c, kh, kw) ordering.
    w_t = weight.reshape(Cout, K)
    b_col = bias.reshape(Cout, 1).astype(jnp.float32)

    # --- Tile selection -----------------------------------------------------
    tm = min(tile_m, M)
    if tm < M:
        tm = max(128, (tm // 128) * 128)  # keep hot tiles lane-dense / unmasked
    # Guarantee >= 2 grid programs (when M is big enough) so both v7x
    # TensorCores get work even at batch 1; also helps DMA/compute overlap.
    if N * pl.cdiv(M, tm) < 2 and M >= 256:
        tm = ((pl.cdiv(M, 2) + 127) // 128) * 128
    grid = (N, pl.cdiv(M, tm))

    out = pl.pallas_call(
        _conv_tanh_kernel,
        out_shape=jax.ShapeDtypeStruct((N, Cout, M), out_dtype),
        grid=grid,
        in_specs=[
            # Patches: tile M; batch index squeezed out of the kernel view.
            pl.BlockSpec((None, K, tm), lambda n, t: (n, 0, t)),
            # Weight / bias: constant block index -> stay resident in VMEM.
            pl.BlockSpec((Cout, K), lambda n, t: (0, 0)),
            pl.BlockSpec((Cout, 1), lambda n, t: (0, 0)),
        ],
        out_specs=pl.BlockSpec((None, Cout, tm), lambda n, t: (n, 0, t)),
        compiler_params=pltpu.CompilerParams(
            dimension_semantics=("parallel", "parallel"),
            vmem_limit_bytes=32 * 1024 * 1024,
        ),
    )(patches_t, w_t, b_col)

    # (N, Cout, Ho*Wo) -> (N, Cout, Ho, Wo): pure reshape, no HBM transpose.
    return out.reshape(N, Cout, Ho, Wo)


if __name__ == "__main__":
    key = jax.random.PRNGKey(0)
    k_x, k_w, k_b = jax.random.split(key, 3)

    N, C, H, W = 2, 3, 16, 16
    Cout, kh, kw = 64, 2, 2

    x = jax.random.normal(k_x, (N, C, H, W), dtype=jnp.float32)
    # Deterministic parameter init (uniform, PyTorch-like fan-in bound).
    fan_in = C * kh * kw
    bound = 1.0 / (fan_in ** 0.5)
    weight = jax.random.uniform(k_w, (Cout, C, kh, kw), dtype=jnp.float32,
                                minval=-bound, maxval=bound)
    bias = jax.random.uniform(k_b, (Cout,), dtype=jnp.float32,
                              minval=-bound, maxval=bound)

    out = conv2d_tanh(x, weight, bias)
    jax.block_until_ready(out)

    # Sanity check against a plain-JAX reference (HIGHEST precision so the
    # reference conv doesn't silently use single-pass bf16 on the MXU).
    ref = jax.lax.conv_general_dilated(
        x, weight, window_strides=(2, 2), padding="VALID",
        dimension_numbers=("NCHW", "OIHW", "NCHW"),
        precision=jax.lax.Precision.HIGHEST)
    ref = jnp.tanh(ref + bias.reshape(1, Cout, 1, 1))
    assert out.shape == (N, Cout, H // 2, W // 2)
    err = float(jnp.max(jnp.abs(out - ref)))
    assert jnp.allclose(out, ref, atol=1e-4), err

    print("KERNEL_OK")
</pallas_src>

<mosaic_0001>
module attributes {stable_mosaic.version = 11 : i64} {
  func.func @_conv_tanh_kernel(%arg0: i32, %arg1: i32, %arg2: memref<1x12x64xf32, #tpu.memory_space<vmem>>, %arg3: memref<64x12xf32, #tpu.memory_space<vmem>>, %arg4: memref<64x1xf32, #tpu.memory_space<vmem>>, %arg5: memref<1x64x64xf32, #tpu.memory_space<vmem>>) attributes {dimension_semantics = [#tpu.dimension_semantics<parallel>, #tpu.dimension_semantics<parallel>], iteration_bounds = array<i64: 2, 1>, scalar_prefetch = 0 : i64, scratch_operands = 0 : i64, tpu.core_type = #tpu.core_type<tc>, window_params = [{transform_indices = @transform_0, window_bounds = array<i64: 1, 12, 64>}, {pipeline_mode = #tpu.pipeline_mode<synchronous>, transform_indices = @transform_1, window_bounds = array<i64: 64, 12>}, {pipeline_mode = #tpu.pipeline_mode<synchronous>, transform_indices = @transform_2, window_bounds = array<i64: 64, 1>}, {transform_indices = @transform_3, window_bounds = array<i64: 1, 64, 64>}]} {
    %c0 = arith.constant 0 : index
    %c0_0 = arith.constant 0 : index
    %0 = vector.load %arg3[%c0, %c0_0] : memref<64x12xf32, #tpu.memory_space<vmem>>, vector<64x12xf32>
    %c0_1 = arith.constant 0 : index
    %c0_2 = arith.constant 0 : index
    %c0_3 = arith.constant 0 : index
    %1 = vector.load %arg2[%c0_1, %c0_2, %c0_3] : memref<1x12x64xf32, #tpu.memory_space<vmem>>, vector<1x12x64xf32>
    %2 = vector.shape_cast %1 : vector<1x12x64xf32> to vector<12x64xf32>
    %cst = arith.constant dense<0.000000e+00> : vector<64x64xf32>
    %3 = tpu.matmul %0, %2, %cst {dimension_numbers = #tpu.dot_dimension_numbers<[1], [0], [0], [1], [0, 0, 1, 1], [], []>} : vector<64x12xf32>, vector<12x64xf32>, vector<64x64xf32> -> vector<64x64xf32>
    %c0_4 = arith.constant 0 : index
    %c0_5 = arith.constant 0 : index
    %4 = vector.load %arg4[%c0_4, %c0_5] : memref<64x1xf32, #tpu.memory_space<vmem>>, vector<64x1xf32>
    %5 = vector.broadcast %4 : vector<64x1xf32> to vector<64x64xf32>
    %6 = arith.addf %3, %5 : vector<64x64xf32>
    %7 = math.tanh %6 : vector<64x64xf32>
    %c0_6 = arith.constant 0 : index
    %c0_7 = arith.constant 0 : index
    %c0_8 = arith.constant 0 : index
    %8 = vector.load %arg5[%c0_6, %c0_7, %c0_8] : memref<1x64x64xf32, #tpu.memory_space<vmem>>, vector<1x64x64xf32>
    %9 = vector.shape_cast %8 : vector<1x64x64xf32> to vector<64x64xf32>
    %10 = vector.shape_cast %7 : vector<64x64xf32> to vector<1x64x64xf32>
    tpu.vector_store %arg5[%c0_6, %c0_7, %c0_8], %10 {strides = array<i32>} : memref<1x64x64xf32, #tpu.memory_space<vmem>>, vector<1x64x64xf32>,
    return
  }
  func.func @transform_0(%arg0: i32, %arg1: i32) -> (i32, i32, i32) {
    %c0_i32 = arith.constant 0 : i32
    %c0_i32_0 = arith.constant 0 : i32
    return %arg0, %c0_i32, %arg1 : i32, i32, i32
  }
  func.func @transform_1(%arg0: i32, %arg1: i32) -> (i32, i32) {
    %c0_i32 = arith.constant 0 : i32
    %c0_i32_0 = arith.constant 0 : i32
    %c0_i32_1 = arith.constant 0 : i32
    return %c0_i32, %c0_i32_0 : i32, i32
  }
  func.func @transform_2(%arg0: i32, %arg1: i32) -> (i32, i32) {
    %c0_i32 = arith.constant 0 : i32
    %c0_i32_0 = arith.constant 0 : i32
    %c0_i32_1 = arith.constant 0 : i32
    return %c0_i32, %c0_i32_0 : i32, i32
  }
  func.func @transform_3(%arg0: i32, %arg1: i32) -> (i32, i32, i32) {
    %c0_i32 = arith.constant 0 : i32
    %c0_i32_0 = arith.constant 0 : i32
    return %arg0, %c0_i32, %arg1 : i32, i32, i32
  }
}

</mosaic_0001>

<llo_original>
// kernel: tpu_custom_call.1
$region0: #{tpu_custom_call.1}
  #allocation0 [shape = 'u32[]', space=smem, size = 0x4, offset = 0x4, fixed_abs, tag = 'smem constant byte address 0x4 - core index']
  #allocation1 [shape = 'u32[144,128]{1,0:T(1,128)}', space=vmem, size = 0x12000, scoped, tag = 'internal scratch']
  %s0 = inlined_call_operand.vmem [shape: f32[2,12,64], index: 0, kind: input, shape index: {}]
  %s1 = inlined_call_operand.vmem [shape: f32[64,12], index: 1, kind: input, shape index: {}]
  %s2 = inlined_call_operand.vmem [shape: f32[64,1], index: 2, kind: input, shape index: {}]
  %s3 = inlined_call_operand.hbm [shape: f32[2,64,64], index: 3, kind: output, shape index: {}]
  %s4 = sld [smem:[#allocation0]]
  $region45: #{tpu_custom_call.1} parent=0
    _
  %s6 = ssub.s32 1, %s4
  %s7 = scalar_select 0, %s6, %s4
  $region1: #{tpu_custom_call.1} parent=0
    #allocation2 [shape = 'u8[65536]{0}', space=vmem, size = 0x10000, scoped, tag = 'output window, operand 0']
    #allocation3 [shape = 's32[2]{0}', space=sflag, size = 0x8, scoped, tag = 'scoped memory for tpu_custom_call.1']
    %8 = vsyncpa [#allocation3], 0
    %s9 = scalar_lea.sflag [#allocation3], 1
    %10 = vsyncpa %s9, 0
    loop: start=0, step=1, limit=4
    $region2: #{tpu_custom_call.1} parent=1 // loop_pre_header
      _
    $region3: #{tpu_custom_call.1} parent=1 // loop_header
      %s12 = sphi 0, %s16
      %p13 = scmp.ge.s32.totalorder %s12, 4
      %s19 = sphi 0, %s31
      %s20 = sphi 0, %s27
      %s21 = sphi 0, %s19
      %s22 = sphi 0, %s20
      %s23 = sphi 0, %s21
      %s24 = sphi 0, %s22
      %s36 = sphi 0, %s38
      %s39 = sphi 0, %s36
      %s40 = sphi 0, %s39
      %s56 = sphi 0, %s40
      %s60 = sphi 0, %s60
      %s62 = sphi 0, %s60
      %s63 = sphi 0, %s62
      %s77 = sphi 0, %s63
      %s81 = sphi 0, %s81
      %s83 = sphi 0, %s81
      %s84 = sphi 0, %s83
      %s98 = sphi 0, %s84
      %s106 = sphi 0, %s108
      %s109 = sphi 0, %s106
      %s110 = sphi 0, %s109
      %s126 = sphi 0, %s110
    $region4: #{tpu_custom_call.1} parent=1 // loop_header_branch
      %15 = sbr.rel (%p13) target = $region8
    $region5: #{tpu_custom_call.1} parent=1 // loop_body
      %s17 = ssub.s32 %s12, 1
      %s18 = ssub.s32 %s12, 2
      %s25 = sadd.s32 1, %s20
      %p26 = scmp.ge.s32.totalorder %s25, 1
      %s27 = scalar_select %p26, 0, %s25
      %s28 = sadd.s32 1, %s19
      %s29 = scalar_select %p26, %s28, %s19
      %p30 = scmp.ge.s32.totalorder %s29, 2
      %s31 = scalar_select %p30, 0, %s29
      %s32 = ssub.s32 %s19, %s31
      %s33 = ssub.s32 %s20, %s27
      %s34 = sor.u32 %s32, %s33
      %p35 = scmp.eq.s32.totalorder %s34, 0
      %s37 = sadd.s32 %s36, 1
      %s38 = scalar_select %p35, %s36, %s37
      %p41 = pneg %p35
      %p42 = scmp.eq.s32.totalorder %s12, 1
      %p43 = por %p41, %p42
      %p44 = scmp.ne.s32.totalorder %s36, %s39
      %p45 = scmp.eq.s32.totalorder %s12, 0
      %p46 = por %p44, %p45
      %p47 = scmp.ne.s32.totalorder %s36, %s39
      %p48 = scmp.eq.s32.totalorder %s17, 1
      %p49 = por %p47, %p48
      %p50 = scmp.ne.s32.totalorder %s39, %s40
      %p51 = scmp.eq.s32.totalorder %s17, 0
      %p52 = por %p50, %p51
      %p53 = scmp.ne.s32.totalorder %s39, %s40
      %p54 = scmp.eq.s32.totalorder %s18, 1
      %p55 = por %p53, %p54
      %p57 = scmp.ne.s32.totalorder %s40, %s56
      %p58 = scmp.eq.s32.totalorder %s18, 0
      %p59 = por %p57, %p58
      %s61 = sadd.s32 %s60, 1
      %p64 = scmp.eq.s32.totalorder %s12, 1
      %p65 = scmp.ne.s32.totalorder %s60, %s62
      %p66 = scmp.eq.s32.totalorder %s12, 0
      %p67 = por %p65, %p66
      %p68 = scmp.ne.s32.totalorder %s60, %s62
      %p69 = scmp.eq.s32.totalorder %s17, 1
      %p70 = por %p68, %p69
      %p71 = scmp.ne.s32.totalorder %s62, %s63
      %p72 = scmp.eq.s32.totalorder %s17, 0
      %p73 = por %p71, %p72
      %p74 = scmp.ne.s32.totalorder %s62, %s63
      %p75 = scmp.eq.s32.totalorder %s18, 1
      %p76 = por %p74, %p75
      %p78 = scmp.ne.s32.totalorder %s63, %s77
      %p79 = scmp.eq.s32.totalorder %s18, 0
      %p80 = por %p78, %p79
      %s82 = sadd.s32 %s81, 1
      %p85 = scmp.eq.s32.totalorder %s12, 1
      %p86 = scmp.ne.s32.totalorder %s81, %s83
      %p87 = scmp.eq.s32.totalorder %s12, 0
      %p88 = por %p86, %p87
      %p89 = scmp.ne.s32.totalorder %s81, %s83
      %p90 = scmp.eq.s32.totalorder %s17, 1
      %p91 = por %p89, %p90
      %p92 = scmp.ne.s32.totalorder %s83, %s84
      %p93 = scmp.eq.s32.totalorder %s17, 0
      %p94 = por %p92, %p93
      %p95 = scmp.ne.s32.totalorder %s83, %s84
      %p96 = scmp.eq.s32.totalorder %s18, 1
      %p97 = por %p95, %p96
      %p99 = scmp.ne.s32.totalorder %s84, %s98
      %p100 = scmp.eq.s32.totalorder %s18, 0
      %p101 = por %p99, %p100
      %s102 = ssub.s32 %s19, %s31
      %s103 = ssub.s32 %s20, %s27
      %s104 = sor.u32 %s102, %s103
      %p105 = scmp.eq.s32.totalorder %s104, 0
      %s107 = sadd.s32 %s106, 1
      %s108 = scalar_select %p105, %s106, %s107
      %p111 = pneg %p105
      %p112 = scmp.eq.s32.totalorder %s12, 1
      %p113 = por %p111, %p112
      %p114 = scmp.ne.s32.totalorder %s106, %s109
      %p115 = scmp.eq.s32.totalorder %s12, 0
      %p116 = por %p114, %p115
      %p117 = scmp.ne.s32.totalorder %s106, %s109
      %p118 = scmp.eq.s32.totalorder %s17, 1
      %p119 = por %p117, %p118
      %p120 = scmp.ne.s32.totalorder %s109, %s110
      %p121 = scmp.eq.s32.totalorder %s17, 0
      %p122 = por %p120, %p121
      %p123 = scmp.ne.s32.totalorder %s109, %s110
      %p124 = scmp.eq.s32.totalorder %s18, 1
      %p125 = por %p123, %p124
      %p127 = scmp.ne.s32.totalorder %s110, %s126
      %p128 = scmp.eq.s32.totalorder %s18, 0
      %p129 = por %p127, %p128
      %p130 = scmp.le.s32.totalorder 1, %s12
      %p131 = scmp.lt.s32.totalorder %s12, 3
      %p132 = pnand %p130, %p131
      %p133 = pneg %p132
      // Predicated region
      $region9: #{tpu_custom_call.1} parent=5 // pred_check
        _
      $region10: #{tpu_custom_call.1} parent=5 // pred_check_branch
        %135 = sbr.rel (%p132) target = $region12
      $region11: #{tpu_custom_call.1} parent=5 // pred_region
        %s136 = ssub.s32 %s12, 1
        // Predicated region
        $region13: #{tpu_custom_call.1} parent=11 // pred_check
          %p137 = pneg %p73
        $region14: #{tpu_custom_call.1} parent=11 // pred_check_branch
          %139 = sbr.rel (%p137) target = $region16
        $region15: #{tpu_custom_call.1} parent=11 // pred_region
          _
        $region16: #{tpu_custom_call.1} parent=11 // pred_fallthru
          _
        // Predicated region
        $region17: #{tpu_custom_call.1} parent=11 // pred_check
          %p140 = pneg %p94
        $region18: #{tpu_custom_call.1} parent=11 // pred_check_branch
          %142 = sbr.rel (%p140) target = $region20
        $region19: #{tpu_custom_call.1} parent=11 // pred_region
          _
        $region20: #{tpu_custom_call.1} parent=11 // pred_fallthru
          _
      $region12: #{tpu_custom_call.1} parent=5 // pred_fallthru
        _
      %p143 = scmp.lt.s32.totalorder %s12, 2
      // Predicated region
      $region21: #{tpu_custom_call.1} parent=5 // pred_check
        %p144 = pneg %p143
      $region22: #{tpu_custom_call.1} parent=5 // pred_check_branch
        %146 = sbr.rel (%p144) target = $region24
      $region23: #{tpu_custom_call.1} parent=5 // pred_region
        // Predicated region
        $region25: #{tpu_custom_call.1} parent=23 // pred_check
          %p147 = pneg %p46
        $region26: #{tpu_custom_call.1} parent=23 // pred_check_branch
          %149 = sbr.rel (%p147) target = $region28
        $region27: #{tpu_custom_call.1} parent=23 // pred_region
          %p150 = scmp.lt.s32.totalorder %s19, 1
          %s151 = scalar_select %p150, %s19, 1
          %p152 = scmp.lt.s32.totalorder %s20, 0
          %s153 = scalar_select %p152, %s20, 0
          %s154 = smul.addr %s151, 2
          %s155 = sadd.s32 %s153, %s154
          %s156 = smul.addr %s155, 8
          %s157 = scalar_lea.vmem %s0, %s156
        $region28: #{tpu_custom_call.1} parent=23 // pred_fallthru
          _
      $region24: #{tpu_custom_call.1} parent=5 // pred_fallthru
        _
      %p158 = scmp.le.s32.totalorder 1, %s12
      %p159 = scmp.lt.s32.totalorder %s12, 3
      %p160 = pnand %p158, %p159
      %p161 = pneg %p160
      // Predicated region
      $region29: #{tpu_custom_call.1} parent=5 // pred_check
        _
      $region30: #{tpu_custom_call.1} parent=5 // pred_check_branch
        %163 = sbr.rel (%p160) target = $region32
      $region31: #{tpu_custom_call.1} parent=5 // pred_region
        %s164 = ssub.s32 %s12, 1
        %p165 = scmp.lt.s32.totalorder %s21, 1
        %s166 = scalar_select %p165, %s21, 1
        %p167 = scmp.lt.s32.totalorder %s22, 0
        %s168 = scalar_select %p167, %s22, 0
        %s169 = smul.addr %s166, 2
        %s170 = sadd.s32 %s168, %s169
        %s171 = smul.addr %s170, 8
        %s172 = scalar_lea.vmem %s0, %s171
        %p173 = pneg %p52
        %p174 = pneg %p49
        %p175 = pneg %p73
        %p176 = pneg %p70
        %p177 = pneg %p94
        %p178 = pneg %p91
        %p179 = pneg %p122
        %p180 = pneg %p119
        %s181 = sand.u32 %s109, 1
        %s182 = scalar_lea.sflag [#allocation3], %s181
        %s183 = sand.u32 %s109, 1
        %s184 = smul.addr %s183, 64
        %s185 = scalar_lea.vmem [#allocation2], %s184
        %p186 = scmp.lt.s32.totalorder %s21, 1
        %s187 = scalar_select %p186, %s21, 1
        %p188 = scmp.lt.s32.totalorder %s22, 0
        %s189 = scalar_select %p188, %s22, 0
        %s190 = smul.addr %s187, 2
        %s191 = sadd.s32 %s189, %s190
        %s192 = smul.addr %s191, 8
        %s193 = scalar_lea.vmem %s0, %s192
        %v194 = vld [vmem:[%s1] sm:$0xff]
        %v195 = vld [vmem:[%s1 + $0x8] sm:$0xff]
        %v196 = vld [vmem:[%s1 + $0x10] sm:$0xff]
        %v197 = vld [vmem:[%s1 + $0x18] sm:$0xff]
        %v198 = vld [vmem:[%s1 + $0x20] sm:$0xff]
        %v199 = vld [vmem:[%s1 + $0x28] sm:$0xff]
        %v200 = vld [vmem:[%s1 + $0x30] sm:$0xff]
        %v201 = vld [vmem:[%s1 + $0x38] sm:$0xff]
        %v202 = vld [vmem:[%s193] sm:$0xff]
        %v203 = vld [vmem:[%s193 + $0x8] sm:$0xf]
        %v204 = vld [vmem:[%s2] sm:$0xff]
        %v205 = vld [vmem:[%s2 + $0x8] sm:$0xff]
        %v206 = vld [vmem:[%s2 + $0x10] sm:$0xff]
        %v207 = vld [vmem:[%s2 + $0x18] sm:$0xff]
        %v208 = vld [vmem:[%s2 + $0x20] sm:$0xff]
        %v209 = vld [vmem:[%s2 + $0x28] sm:$0xff]
        %v210 = vld [vmem:[%s2 + $0x30] sm:$0xff]
        %v211 = vld [vmem:[%s2 + $0x38] sm:$0xff]
        %213 = vset.pattern.permute.xlu0 0
        %214 = vperm.xlu0 %213, %v204
        %v215 = vpop.permute.xlu0 %214
        %218 = vset.pattern.permute.xlu0 0
        %219 = vperm.xlu0 %218, %v205
        %v220 = vpop.permute.xlu0 %219
        %223 = vset.pattern.permute.xlu0 0
        %224 = vperm.xlu0 %223, %v206
        %v225 = vpop.permute.xlu0 %224
        %228 = vset.pattern.permute.xlu0 0
        %229 = vperm.xlu0 %228, %v207
        %v230 = vpop.permute.xlu0 %229
        %233 = vset.pattern.permute.xlu0 0
        %234 = vperm.xlu0 %233, %v208
        %v235 = vpop.permute.xlu0 %234
        %238 = vset.pattern.permute.xlu0 0
        %239 = vperm.xlu0 %238, %v209
        %v240 = vpop.permute.xlu0 %239
        %243 = vset.pattern.permute.xlu0 0
        %244 = vperm.xlu0 %243, %v210
        %v245 = vpop.permute.xlu0 %244
        %248 = vset.pattern.permute.xlu0 0
        %249 = vperm.xlu0 %248, %v211
        %v250 = vpop.permute.xlu0 %249
        %vm252 = vcmask 97280
        %v254 = vsel %vm252, %v194, 0
        %v257 = vsel %vm252, %v195, 0
        %v260 = vsel %vm252, %v196, 0
        %v263 = vsel %vm252, %v197, 0
        %v266 = vsel %vm252, %v198, 0
        %v269 = vsel %vm252, %v199, 0
        %v272 = vsel %vm252, %v200, 0
        %v275 = vsel %vm252, %v201, 0
        %vm277 = vcmask 1043456
        %v279 = vsel %vm277, %v203, 0
        %281 = vmatprep.subr.mxu0 0.0
        %282 = vmatpush1.msra.mxu0 %v202
        %283 = vmatprep.subr.mxu0 0.0
        %284 = vmatpush1.msra.mxu0 %v279
        %285 = vmatprep.subr.mxu0 0.0
        %286 = vmatpush1.msra.mxu0 0.0
        %287 = vmatprep.subr.mxu0 0.0
        %288 = vmatpush1.msra.mxu0 0.0
        %289 = vmatprep.subr.mxu0 0.0
        %290 = vmatpush1.msra.mxu0 0.0
        %291 = vmatprep.subr.mxu0 0.0
        %292 = vmatpush1.msra.mxu0 0.0
        %293 = vmatprep.subr.mxu0 0.0
        %294 = vmatpush1.msra.mxu0 0.0
        %295 = vmatprep.subr.mxu0 0.0
        %296 = vmatpush1.msra.mxu0 0.0
        %297 = vmatprep.subr.mxu0 0.0
        %298 = vmatpush1.msra.mxu0 0.0
        %299 = vmatprep.subr.mxu0 0.0
        %300 = vmatpush1.msra.mxu0 0.0
        %301 = vmatprep.subr.mxu0 0.0
        %302 = vmatpush1.msra.mxu0 0.0
        %303 = vmatprep.subr.mxu0 0.0
        %304 = vmatpush1.msra.mxu0 0.0
        %305 = vmatprep.subr.mxu0 0.0
        %306 = vmatpush1.msra.mxu0 0.0
        %307 = vmatprep.subr.mxu0 0.0
        %308 = vmatpush1.msra.mxu0 0.0
        %309 = vmatprep.subr.mxu0 0.0
        %310 = vmatpush1.msra.mxu0 0.0
        %311 = vmatprep.subr.mxu0 0.0
        %312 = vmatpush1.msra.mxu0 0.0
        %313 = vmatprep.subr.mxu0 0.0
        %314 = vmatpush1.msra.mxu0 0.0
        %315 = vmatprep.subr.mxu0 0.0
        %316 = vmatpush1.msra.mxu0 0.0
        %317 = vmatprep.subr.mxu0 0.0
        %318 = vmatpush1.msra.mxu0 0.0
        %319 = vmatprep.subr.mxu0 0.0
        %320 = vmatpush1.msra.mxu0 0.0
        %321 = vmatprep.subr.mxu0 0.0
        %322 = vmatpush1.msra.mxu0 0.0
        %323 = vmatprep.subr.mxu0 0.0
        %324 = vmatpush1.msra.mxu0 0.0
        %325 = vmatprep.subr.mxu0 0.0
        %326 = vmatpush1.msra.mxu0 0.0
        %327 = vmatprep.subr.mxu0 0.0
        %328 = vmatpush1.msra.mxu0 0.0
        %329 = vmatprep.subr.mxu0 0.0
        %330 = vmatpush1.msra.mxu0 0.0
        %331 = vmatprep.subr.mxu0 0.0
        %332 = vmatpush1.msra.mxu0 0.0
        %333 = vmatprep.subr.mxu0 0.0
        %334 = vmatpush1.msra.mxu0 0.0
        %335 = vmatprep.subr.mxu0 0.0
        %336 = vmatpush1.msra.mxu0 0.0
        %337 = vmatprep.subr.mxu0 0.0
        %338 = vmatpush1.msra.mxu0 0.0
        %339 = vmatprep.subr.mxu0 0.0
        %340 = vmatpush1.msra.mxu0 0.0
        %341 = vmatprep.subr.mxu0 0.0
        %342 = vmatpush1.msra.mxu0 0.0
        %343 = vmatprep.subr.mxu0 0.0
        %344 = vmatpush1.msra.mxu0 0.0
        %345 = vmatprep.mubr.f32.mxu0 0.0
        %346 = vmatmul.mubr.f32.gmra.mrb[0].mxu0 %v254
        %v347 = vpop.f32.mrb[0].mxu0
        %v348 = vadd.f32 %v215, %v347
        %v349 = vpop.f32.mrb[0].mxu0
        %350 = vmatprep.mubr.f32.mxu0 0.0
        %351 = vmatmul.mubr.f32.gmra.mrb[0].mxu0 %v257
        %v352 = vpop.f32.mrb[0].mxu0
        %v353 = vadd.f32 %v220, %v352
        %v354 = vpop.f32.mrb[0].mxu0
        %355 = vmatprep.mubr.f32.mxu0 0.0
        %356 = vmatmul.mubr.f32.gmra.mrb[0].mxu0 %v260
        %v357 = vpop.f32.mrb[0].mxu0
        %v358 = vadd.f32 %v225, %v357
        %v359 = vpop.f32.mrb[0].mxu0
        %360 = vmatprep.mubr.f32.mxu0 0.0
        %361 = vmatmul.mubr.f32.gmra.mrb[0].mxu0 %v263
        %v362 = vpop.f32.mrb[0].mxu0
        %v363 = vadd.f32 %v230, %v362
        %v364 = vpop.f32.mrb[0].mxu0
        %365 = vmatprep.mubr.f32.mxu0 0.0
        %366 = vmatmul.mubr.f32.gmra.mrb[0].mxu0 %v266
        %v367 = vpop.f32.mrb[0].mxu0
        %v368 = vadd.f32 %v235, %v367
        %v369 = vpop.f32.mrb[0].mxu0
        %370 = vmatprep.mubr.f32.mxu0 0.0
        %371 = vmatmul.mubr.f32.gmra.mrb[0].mxu0 %v269
        %v372 = vpop.f32.mrb[0].mxu0
        %v373 = vadd.f32 %v240, %v372
        %v374 = vpop.f32.mrb[0].mxu0
        %375 = vmatprep.mubr.f32.mxu0 0.0
        %376 = vmatmul.mubr.f32.gmra.mrb[0].mxu0 %v272
        %v377 = vpop.f32.mrb[0].mxu0
        %v378 = vadd.f32 %v245, %v377
        %v379 = vpop.f32.mrb[0].mxu0
        %380 = vmatprep.mubr.f32.mxu0 0.0
        %381 = vmatmul.mubr.f32.gmra.mrb[0].mxu0 %v275
        %v382 = vpop.f32.mrb[0].mxu0
        %v383 = vadd.f32 %v250, %v382
        %v384 = vpop.f32.mrb[0].mxu0
        %385 = vdwg.mxu0
        %v386 = vtanh.pop %v348
        %v387 = vtanh.pop %v353
        %v388 = vtanh.pop %v358
        %v389 = vtanh.pop %v363
        %v390 = vtanh.pop %v368
        %v391 = vtanh.pop %v373
        %v392 = vtanh.pop %v378
        %v393 = vtanh.pop %v383
        %vm394 = vcmask 523264
        %395 = vst.msk [vmem:[%s185] sm:$0xff] %vm394, %v386
        %396 = vst.msk [vmem:[%s185 + $0x8] sm:$0xff] %vm394, %v387
        %397 = vst.msk [vmem:[%s185 + $0x10] sm:$0xff] %vm394, %v388
        %398 = vst.msk [vmem:[%s185 + $0x18] sm:$0xff] %vm394, %v389
        %399 = vst.msk [vmem:[%s185 + $0x20] sm:$0xff] %vm394, %v390
        %400 = vst.msk [vmem:[%s185 + $0x28] sm:$0xff] %vm394, %v391
        %401 = vst.msk [vmem:[%s185 + $0x30] sm:$0xff] %vm394, %v392
        %402 = vst.msk [vmem:[%s185 + $0x38] sm:$0xff] %vm394, %v393
        %s403 = sand.u32 %s109, 1
        %s404 = scalar_lea.sflag [#allocation3], %s403
        %s405 = sand.u32 %s109, 1
        %s406 = smul.addr %s405, 64
        %s407 = scalar_lea.vmem [#allocation2], %s406
        // Predicated region
        $region33: #{tpu_custom_call.1} parent=31 // pred_check
          %p408 = pneg %p119
        $region34: #{tpu_custom_call.1} parent=31 // pred_check_branch
          %410 = sbr.rel (%p408) target = $region36
        $region35: #{tpu_custom_call.1} parent=31 // pred_region
          %s412 = ssub.s32 1024, 1024
          %413 = vsyncadd %s404, %s412
          %s414 = smul.addr %s21, 8
          %s415 = sadd.s32 %s22, %s414
          %s416 = smul.addr %s415, 128
          %s417 = scalar_lea.hbm %s3, %s416
          %s418 = sshll.u32 %s407, 4
          %s419 = int_to_ptr.vmem [resolvable:$true] %s418
          %424 = dma.vmem_to_hbm [thread:$0]  %s419, 1024, %s417, %s404, 128, 128, 8
        $region36: #{tpu_custom_call.1} parent=31 // pred_fallthru
          _
      $region32: #{tpu_custom_call.1} parent=5 // pred_fallthru
        _
      %p425 = scmp.le.s32.totalorder 2, %s12
      // Predicated region
      $region37: #{tpu_custom_call.1} parent=5 // pred_check
        %p426 = pneg %p425
      $region38: #{tpu_custom_call.1} parent=5 // pred_check_branch
        %428 = sbr.rel (%p426) target = $region40
      $region39: #{tpu_custom_call.1} parent=5 // pred_region
        %s429 = ssub.s32 %s12, 2
        // Predicated region
        $region41: #{tpu_custom_call.1} parent=39 // pred_check
          %p430 = pneg %p125
        $region42: #{tpu_custom_call.1} parent=39 // pred_check_branch
          %432 = sbr.rel (%p430) target = $region44
        $region43: #{tpu_custom_call.1} parent=39 // pred_region
          %s433 = sand.u32 %s110, 1
          %s434 = scalar_lea.sflag [#allocation3], %s433
          %s435 = sand.u32 %s110, 1
          %s436 = smul.addr %s435, 64
          %s437 = scalar_lea.vmem [#allocation2], %s436
          %438 = dma.done %s434, 1024
        $region44: #{tpu_custom_call.1} parent=39 // pred_fallthru
          _
      $region40: #{tpu_custom_call.1} parent=5 // pred_fallthru
        _
    $region6: #{tpu_custom_call.1} parent=1 // loop_footer
      %s16 = sadd.s32 1, %s12
    $region7: #{tpu_custom_call.1} parent=1 // loop_footer_branch
      %11 = sbr.rel target = $region3
    $region8: #{tpu_custom_call.1} parent=1 // loop_exit
      _
    %439 = vsyncpa [#allocation3], 1
    %s440 = scalar_lea.sflag [#allocation3], 1
    %441 = vsyncpa %s440, 1

</llo_original>
